<compile_context>
chip_gen: v5e
topology: v5e:2x2
jax: 0.10.0
libtpu: 0.0.40
codegen_flags: <defaults>
</compile_context>

<pallas_src>
import functools
import math

import jax
import jax.numpy as jnp
from jax.experimental import pallas as pl
from jax.experimental.pallas import tpu as pltpu

STD_MIN = 0.01
STD_MAX = 1.0


def _swish(v, beta):
    # x * sigmoid(beta * x), with sigmoid(z) = 0.5*(tanh(0.5*z)+1)
    # -> one EUP transcendental + two cheap VPU ops per element.
    return v * (0.5 * (jnp.tanh(0.5 * beta * v) + 1.0))


def score_fn_kernel(
    # data (tiled over the batch grid)
    x_ref, ncond_ref,
    # input_network params
    w1_ref, b1_ref, beta1_ref,
    w2_ref, b2_ref, beta2_ref,
    w3_ref, b3_ref,
    # noise_network params
    nw1_ref, nb1_ref, nbeta1_ref,
    nw2_ref, nb2_ref, nbeta2_ref,
    nw3_ref, nb3_ref,
    # concat_network params (257-wide weight split at column 256)
    wc_x_ref, wc_n_ref, bc_ref,
    # act_ = Swish(257) beta (split the same way)
    betac_x_ref, betac_n_ref,
    # output
    out_ref,
    *, std_min, std_max,
):
    x = x_ref[...]                      # (TB, 2)  f32
    n = ncond_ref[...]                  # (TB, 1)  f32

    # n_std = std_min * (std_max / std_min) ** n_cond   (one EUP exp on (TB,1))
    log_ratio = math.log(std_max / std_min)
    n_std = std_min * jnp.exp(n * log_ratio)             # (TB, 1)

    # ---- noise_network: Linear(1,1) -> Swish(1) -> Linear(1,1) -> Swish(1) -> Linear(1,1)
    # Lane-sparse (TB,1) path: keep it minimal, all on VPU/EUP.
    h = n_std * nw1_ref[0, 0] + nb1_ref[0, 0]
    h = _swish(h, nbeta1_ref[0, 0])
    h = h * nw2_ref[0, 0] + nb2_ref[0, 0]
    h = _swish(h, nbeta2_ref[0, 0])
    n_out = h * nw3_ref[0, 0] + nb3_ref[0, 0]             # (TB, 1)

    # ---- input_network
    # Layer 1 (K=2): two broadcast FMAs on the VPU instead of a tiny MXU matmul.
    h1 = (x[:, 0:1] * w1_ref[0:1, :]
          + x[:, 1:2] * w1_ref[1:2, :]
          + b1_ref[...])                                  # (TB, 64) f32
    h1 = _swish(h1, beta1_ref[...])

    # Layers 2 & 3: MXU matmuls with bf16 operands, f32 accumulation.
    h2 = jnp.dot(h1.astype(jnp.bfloat16), w2_ref[...],
                 preferred_element_type=jnp.float32) + b2_ref[...]   # (TB, 128)
    h2 = _swish(h2, beta2_ref[...])
    x_ = jnp.dot(h2.astype(jnp.bfloat16), w3_ref[...],
                 preferred_element_type=jnp.float32) + b3_ref[...]   # (TB, 256)

    # ---- act_ = Swish(257) applied to cat([x_, n_out], axis=1), done piecewise
    a_x = _swish(x_, betac_x_ref[...])                    # (TB, 256)
    a_n = _swish(n_out, betac_n_ref[0, 0])                # (TB, 1)

    # ---- concat_network: Linear(257, 2) = (256,2) MXU matmul + (1,2) VPU rank-1 term
    cat_out = (jnp.dot(a_x.astype(jnp.bfloat16), wc_x_ref[...],
                       preferred_element_type=jnp.float32)
               + a_n * wc_n_ref[...]
               + bc_ref[...])                             # (TB, 2)

    # ---- out = (x - concat_network(act_(cat))) / n_cond[:, None]
    inv_std = pl.reciprocal(n_std, approx=True)           # EUP approx rcp, then VPU mul
    out_ref[...] = (x - cat_out) * inv_std


def init_params(key):
    """Deterministic parameter init (shapes follow the PyTorch module)."""
    def linear(key, fan_in, fan_out):
        k1, k2 = jax.random.split(key)
        bound = 1.0 / jnp.sqrt(fan_in)
        w = jax.random.uniform(k1, (fan_in, fan_out), jnp.float32, -bound, bound)
        b = jax.random.uniform(k2, (1, fan_out), jnp.float32, -bound, bound)
        return w, b

    keys = jax.random.split(key, 8)
    w1, b1 = linear(keys[0], 2, 64)
    w2, b2 = linear(keys[1], 64, 128)
    w3, b3 = linear(keys[2], 128, 256)
    nw1, nb1 = linear(keys[3], 1, 1)
    nw2, nb2 = linear(keys[4], 1, 1)
    nw3, nb3 = linear(keys[5], 1, 1)
    wc, bc = linear(keys[6], 257, 2)

    params = dict(
        w1=w1, b1=b1, beta1=jnp.ones((1, 64), jnp.float32),
        w2=w2, b2=b2, beta2=jnp.ones((1, 128), jnp.float32),
        w3=w3, b3=b3,
        nw1=nw1, nb1=nb1, nbeta1=jnp.ones((1, 1), jnp.float32),
        nw2=nw2, nb2=nb2, nbeta2=jnp.ones((1, 1), jnp.float32),
        nw3=nw3, nb3=nb3,
        wc_x=wc[:256, :], wc_n=wc[256:257, :], bc=bc,
        betac_x=jnp.ones((1, 256), jnp.float32),   # Swish(257) beta, cols 0..255
        betac_n=jnp.ones((1, 1), jnp.float32),     # Swish(257) beta, col 256
    )
    return params


_PARAM_ORDER = (
    "w1", "b1", "beta1",
    "w2", "b2", "beta2",
    "w3", "b3",
    "nw1", "nb1", "nbeta1",
    "nw2", "nb2", "nbeta2",
    "nw3", "nb3",
    "wc_x", "wc_n", "bc",
    "betac_x", "betac_n",
)

# Weights fed to the MXU get bf16 operands (f32 accumulation stays in-kernel).
_BF16_PARAMS = ("w2", "w3", "wc_x")


@functools.partial(jax.jit, static_argnames=("block_b",))
def simple_score_fn_forward(x, n_cond, params, *, block_b=2048):
    B = x.shape[0]
    x = x.astype(jnp.float32)
    n = n_cond.reshape(B, 1).astype(jnp.float32)

    # Batch tiling: one kernel invocation per block of TB rows.
    if B <= block_b:
        TB, Bp = B, B
    else:
        TB = block_b
        Bp = pl.cdiv(B, TB) * TB
    if Bp != B:
        x = jnp.pad(x, ((0, Bp - B), (0, 0)))
        n = jnp.pad(n, ((0, Bp - B), (0, 0)))   # pad n_cond=0 -> n_std=std_min (nonzero)

    def _cast(k, v):
        return v.astype(jnp.bfloat16) if k in _BF16_PARAMS else v.astype(jnp.float32)

    plist = [_cast(k, params[k]) for k in _PARAM_ORDER]

    kernel = functools.partial(score_fn_kernel, std_min=STD_MIN, std_max=STD_MAX)

    # Data tiles move with the grid; parameters use a constant index_map so they
    # are DMA'd once and stay resident in VMEM across all batch blocks.
    data_in_specs = [
        pl.BlockSpec((TB, 2), lambda i: (i, 0)),
        pl.BlockSpec((TB, 1), lambda i: (i, 0)),
    ]
    param_in_specs = [pl.BlockSpec(p.shape, lambda i: (0, 0)) for p in plist]

    out = pl.pallas_call(
        kernel,
        out_shape=jax.ShapeDtypeStruct((Bp, 2), jnp.float32),
        grid=(Bp // TB,),
        in_specs=data_in_specs + param_in_specs,
        out_specs=pl.BlockSpec((TB, 2), lambda i: (i, 0)),
        compiler_params=pltpu.CompilerParams(
            dimension_semantics=("parallel",),       # megacore sharding on v7x
            vmem_limit_bytes=32 * 1024 * 1024,
        ),
    )(x, n, *plist)
    return out[:B]


def reference_forward(x, n_cond, params):
    """Pure-JAX f32 reference mirroring the PyTorch forward."""
    p = params
    n_std = STD_MIN * (STD_MAX / STD_MIN) ** n_cond          # (B,)
    n_ = n_std[:, None]                                       # (B, 1)
    h = n_ @ p["nw1"] + p["nb1"]
    h = h * jax.nn.sigmoid(p["nbeta1"] * h)
    h = h @ p["nw2"] + p["nb2"]
    h = h * jax.nn.sigmoid(p["nbeta2"] * h)
    n_out = h @ p["nw3"] + p["nb3"]

    h1 = x @ p["w1"] + p["b1"]
    h1 = h1 * jax.nn.sigmoid(p["beta1"] * h1)
    h2 = h1 @ p["w2"] + p["b2"]
    h2 = h2 * jax.nn.sigmoid(p["beta2"] * h2)
    x_ = h2 @ p["w3"] + p["b3"]

    cat = jnp.concatenate([x_, n_out], axis=1)                # (B, 257)
    beta_cat = jnp.concatenate([p["betac_x"], p["betac_n"]], axis=1)
    a = cat * jax.nn.sigmoid(beta_cat * cat)
    wc = jnp.concatenate([p["wc_x"], p["wc_n"]], axis=0)      # (257, 2)
    out = a @ wc + p["bc"]
    return (x - out) / n_std[:, None]


if __name__ == "__main__":
    key = jax.random.PRNGKey(0)
    kx, kn, kp = jax.random.split(key, 3)

    B = 8
    x = jax.random.normal(kx, (B, 2), jnp.float32)            # 2-D points
    n_cond = jax.random.uniform(kn, (B,), jnp.float32)        # noise-level index in [0,1)
    params = init_params(kp)

    out = simple_score_fn_forward(x, n_cond, params)
    out = jax.block_until_ready(out)

    ref = reference_forward(x, n_cond, params)
    assert out.shape == (B, 2)
    # Tolerance accounts for bf16 MXU operands + approx reciprocal vs the f32 reference
    # (the 1/n_std factor amplifies absolute error by up to 100x).
    assert jnp.allclose(out, ref, atol=5e-2, rtol=5e-2), (out, ref)

    print("KERNEL_OK")
</pallas_src>

<mosaic_0001>
module attributes {stable_mosaic.version = 11 : i64} {
  func.func @score_fn_kernel(%arg0: i32, %arg1: memref<8x2xf32, #tpu.memory_space<vmem>>, %arg2: memref<8x1xf32, #tpu.memory_space<vmem>>, %arg3: memref<2x64xf32, #tpu.memory_space<vmem>>, %arg4: memref<1x64xf32, #tpu.memory_space<vmem>>, %arg5: memref<1x64xf32, #tpu.memory_space<vmem>>, %arg6: memref<64x128xbf16, #tpu.memory_space<vmem>>, %arg7: memref<1x128xf32, #tpu.memory_space<vmem>>, %arg8: memref<1x128xf32, #tpu.memory_space<vmem>>, %arg9: memref<128x256xbf16, #tpu.memory_space<vmem>>, %arg10: memref<1x256xf32, #tpu.memory_space<vmem>>, %arg11: memref<1x1xf32, #tpu.memory_space<vmem>>, %arg12: memref<1x1xf32, #tpu.memory_space<vmem>>, %arg13: memref<1x1xf32, #tpu.memory_space<vmem>>, %arg14: memref<1x1xf32, #tpu.memory_space<vmem>>, %arg15: memref<1x1xf32, #tpu.memory_space<vmem>>, %arg16: memref<1x1xf32, #tpu.memory_space<vmem>>, %arg17: memref<1x1xf32, #tpu.memory_space<vmem>>, %arg18: memref<1x1xf32, #tpu.memory_space<vmem>>, %arg19: memref<256x2xbf16, #tpu.memory_space<vmem>>, %arg20: memref<1x2xf32, #tpu.memory_space<vmem>>, %arg21: memref<1x2xf32, #tpu.memory_space<vmem>>, %arg22: memref<1x256xf32, #tpu.memory_space<vmem>>, %arg23: memref<1x1xf32, #tpu.memory_space<vmem>>, %arg24: memref<8x2xf32, #tpu.memory_space<vmem>>) attributes {dimension_semantics = [#tpu.dimension_semantics<parallel>], iteration_bounds = array<i64: 1>, scalar_prefetch = 0 : i64, scratch_operands = 0 : i64, tpu.core_type = #tpu.core_type<tc>, window_params = [{transform_indices = @transform_0, window_bounds = array<i64: 8, 2>}, {transform_indices = @transform_1, window_bounds = array<i64: 8, 1>}, {pipeline_mode = #tpu.pipeline_mode<synchronous>, transform_indices = @transform_2, window_bounds = array<i64: 2, 64>}, {pipeline_mode = #tpu.pipeline_mode<synchronous>, transform_indices = @transform_3, window_bounds = array<i64: 1, 64>}, {pipeline_mode = #tpu.pipeline_mode<synchronous>, transform_indices = @transform_4, window_bounds = array<i64: 1, 64>}, {pipeline_mode = #tpu.pipeline_mode<synchronous>, transform_indices = @transform_5, window_bounds = array<i64: 64, 128>}, {pipeline_mode = #tpu.pipeline_mode<synchronous>, transform_indices = @transform_6, window_bounds = array<i64: 1, 128>}, {pipeline_mode = #tpu.pipeline_mode<synchronous>, transform_indices = @transform_7, window_bounds = array<i64: 1, 128>}, {pipeline_mode = #tpu.pipeline_mode<synchronous>, transform_indices = @transform_8, window_bounds = array<i64: 128, 256>}, {pipeline_mode = #tpu.pipeline_mode<synchronous>, transform_indices = @transform_9, window_bounds = array<i64: 1, 256>}, {pipeline_mode = #tpu.pipeline_mode<synchronous>, transform_indices = @transform_10, window_bounds = array<i64: 1, 1>}, {pipeline_mode = #tpu.pipeline_mode<synchronous>, transform_indices = @transform_11, window_bounds = array<i64: 1, 1>}, {pipeline_mode = #tpu.pipeline_mode<synchronous>, transform_indices = @transform_12, window_bounds = array<i64: 1, 1>}, {pipeline_mode = #tpu.pipeline_mode<synchronous>, transform_indices = @transform_13, window_bounds = array<i64: 1, 1>}, {pipeline_mode = #tpu.pipeline_mode<synchronous>, transform_indices = @transform_14, window_bounds = array<i64: 1, 1>}, {pipeline_mode = #tpu.pipeline_mode<synchronous>, transform_indices = @transform_15, window_bounds = array<i64: 1, 1>}, {pipeline_mode = #tpu.pipeline_mode<synchronous>, transform_indices = @transform_16, window_bounds = array<i64: 1, 1>}, {pipeline_mode = #tpu.pipeline_mode<synchronous>, transform_indices = @transform_17, window_bounds = array<i64: 1, 1>}, {pipeline_mode = #tpu.pipeline_mode<synchronous>, transform_indices = @transform_18, window_bounds = array<i64: 256, 2>}, {pipeline_mode = #tpu.pipeline_mode<synchronous>, transform_indices = @transform_19, window_bounds = array<i64: 1, 2>}, {pipeline_mode = #tpu.pipeline_mode<synchronous>, transform_indices = @transform_20, window_bounds = array<i64: 1, 2>}, {pipeline_mode = #tpu.pipeline_mode<synchronous>, transform_indices = @transform_21, window_bounds = array<i64: 1, 256>}, {pipeline_mode = #tpu.pipeline_mode<synchronous>, transform_indices = @transform_22, window_bounds = array<i64: 1, 1>}, {transform_indices = @transform_23, window_bounds = array<i64: 8, 2>}]} {
    %c0 = arith.constant 0 : index
    %c0_0 = arith.constant 0 : index
    %0 = vector.load %arg1[%c0, %c0_0] : memref<8x2xf32, #tpu.memory_space<vmem>>, vector<8x2xf32>
    %c0_1 = arith.constant 0 : index
    %c0_2 = arith.constant 0 : index
    %1 = vector.load %arg2[%c0_1, %c0_2] : memref<8x1xf32, #tpu.memory_space<vmem>>, vector<8x1xf32>
    %cst = arith.constant 4.60517025 : f32
    %2 = vector.broadcast %cst : f32 to vector<8x1xf32>
    %3 = arith.mulf %1, %2 : vector<8x1xf32>
    %4 = math.exp %3 : vector<8x1xf32>
    %cst_3 = arith.constant 0.00999999977 : f32
    %5 = vector.broadcast %cst_3 : f32 to vector<8x1xf32>
    %6 = arith.mulf %5, %4 : vector<8x1xf32>
    %c0_4 = arith.constant 0 : index
    %c0_5 = arith.constant 0 : index
    %7 = vector.load %arg11[%c0_4, %c0_5] : memref<1x1xf32, #tpu.memory_space<vmem>>, vector<1x1xf32>
    %8 = vector.extract %7[0, 0] : f32 from vector<1x1xf32>
    %9 = vector.broadcast %8 : f32 to vector<8x1xf32>
    %10 = arith.mulf %6, %9 : vector<8x1xf32>
    %c0_6 = arith.constant 0 : index
    %c0_7 = arith.constant 0 : index
    %11 = vector.load %arg12[%c0_6, %c0_7] : memref<1x1xf32, #tpu.memory_space<vmem>>, vector<1x1xf32>
    %12 = vector.extract %11[0, 0] : f32 from vector<1x1xf32>
    %13 = vector.broadcast %12 : f32 to vector<8x1xf32>
    %14 = arith.addf %10, %13 : vector<8x1xf32>
    %c0_8 = arith.constant 0 : index
    %c0_9 = arith.constant 0 : index
    %15 = vector.load %arg13[%c0_8, %c0_9] : memref<1x1xf32, #tpu.memory_space<vmem>>, vector<1x1xf32>
    %16 = vector.extract %15[0, 0] : f32 from vector<1x1xf32>
    %cst_10 = arith.constant 5.000000e-01 : f32
    %17 = arith.mulf %cst_10, %16 : f32
    %18 = vector.broadcast %17 : f32 to vector<8x1xf32>
    %19 = arith.mulf %18, %14 : vector<8x1xf32>
    %20 = math.tanh %19 : vector<8x1xf32>
    %cst_11 = arith.constant 1.000000e+00 : f32
    %21 = vector.broadcast %cst_11 : f32 to vector<8x1xf32>
    %22 = arith.addf %20, %21 : vector<8x1xf32>
    %cst_12 = arith.constant 5.000000e-01 : f32
    %23 = vector.broadcast %cst_12 : f32 to vector<8x1xf32>
    %24 = arith.mulf %23, %22 : vector<8x1xf32>
    %25 = arith.mulf %14, %24 : vector<8x1xf32>
    %c0_13 = arith.constant 0 : index
    %c0_14 = arith.constant 0 : index
    %26 = vector.load %arg14[%c0_13, %c0_14] : memref<1x1xf32, #tpu.memory_space<vmem>>, vector<1x1xf32>
    %27 = vector.extract %26[0, 0] : f32 from vector<1x1xf32>
    %28 = vector.broadcast %27 : f32 to vector<8x1xf32>
    %29 = arith.mulf %25, %28 : vector<8x1xf32>
    %c0_15 = arith.constant 0 : index
    %c0_16 = arith.constant 0 : index
    %30 = vector.load %arg15[%c0_15, %c0_16] : memref<1x1xf32, #tpu.memory_space<vmem>>, vector<1x1xf32>
    %31 = vector.extract %30[0, 0] : f32 from vector<1x1xf32>
    %32 = vector.broadcast %31 : f32 to vector<8x1xf32>
    %33 = arith.addf %29, %32 : vector<8x1xf32>
    %c0_17 = arith.constant 0 : index
    %c0_18 = arith.constant 0 : index
    %34 = vector.load %arg16[%c0_17, %c0_18] : memref<1x1xf32, #tpu.memory_space<vmem>>, vector<1x1xf32>
    %35 = vector.extract %34[0, 0] : f32 from vector<1x1xf32>
    %cst_19 = arith.constant 5.000000e-01 : f32
    %36 = arith.mulf %cst_19, %35 : f32
    %37 = vector.broadcast %36 : f32 to vector<8x1xf32>
    %38 = arith.mulf %37, %33 : vector<8x1xf32>
    %39 = math.tanh %38 : vector<8x1xf32>
    %cst_20 = arith.constant 1.000000e+00 : f32
    %40 = vector.broadcast %cst_20 : f32 to vector<8x1xf32>
    %41 = arith.addf %39, %40 : vector<8x1xf32>
    %cst_21 = arith.constant 5.000000e-01 : f32
    %42 = vector.broadcast %cst_21 : f32 to vector<8x1xf32>
    %43 = arith.mulf %42, %41 : vector<8x1xf32>
    %44 = arith.mulf %33, %43 : vector<8x1xf32>
    %c0_22 = arith.constant 0 : index
    %c0_23 = arith.constant 0 : index
    %45 = vector.load %arg17[%c0_22, %c0_23] : memref<1x1xf32, #tpu.memory_space<vmem>>, vector<1x1xf32>
    %46 = vector.extract %45[0, 0] : f32 from vector<1x1xf32>
    %47 = vector.broadcast %46 : f32 to vector<8x1xf32>
    %48 = arith.mulf %44, %47 : vector<8x1xf32>
    %c0_24 = arith.constant 0 : index
    %c0_25 = arith.constant 0 : index
    %49 = vector.load %arg18[%c0_24, %c0_25] : memref<1x1xf32, #tpu.memory_space<vmem>>, vector<1x1xf32>
    %50 = vector.extract %49[0, 0] : f32 from vector<1x1xf32>
    %51 = vector.broadcast %50 : f32 to vector<8x1xf32>
    %52 = arith.addf %48, %51 : vector<8x1xf32>
    %53 = vector.extract_strided_slice %0 {offsets = [0, 0], sizes = [8, 1], strides = [1, 1]} : vector<8x2xf32> to vector<8x1xf32>
    %c0_26 = arith.constant 0 : index
    %c0_27 = arith.constant 0 : index
    %54 = vector.load %arg3[%c0_26, %c0_27] : memref<2x64xf32, #tpu.memory_space<vmem>>, vector<1x64xf32>
    %55 = vector.broadcast %53 : vector<8x1xf32> to vector<8x64xf32>
    %56 = vector.broadcast %54 : vector<1x64xf32> to vector<8x64xf32>
    %57 = arith.mulf %55, %56 : vector<8x64xf32>
    %58 = vector.extract_strided_slice %0 {offsets = [0, 1], sizes = [8, 1], strides = [1, 1]} : vector<8x2xf32> to vector<8x1xf32>
    %c1 = arith.constant 1 : index
    %c0_28 = arith.constant 0 : index
    %59 = vector.load %arg3[%c1, %c0_28] : memref<2x64xf32, #tpu.memory_space<vmem>>, vector<1x64xf32>
    %60 = vector.broadcast %58 : vector<8x1xf32> to vector<8x64xf32>
    %61 = vector.broadcast %59 : vector<1x64xf32> to vector<8x64xf32>
    %62 = arith.mulf %60, %61 : vector<8x64xf32>
    %63 = arith.addf %57, %62 : vector<8x64xf32>
    %c0_29 = arith.constant 0 : index
    %c0_30 = arith.constant 0 : index
    %64 = vector.load %arg4[%c0_29, %c0_30] : memref<1x64xf32, #tpu.memory_space<vmem>>, vector<1x64xf32>
    %65 = vector.broadcast %64 : vector<1x64xf32> to vector<8x64xf32>
    %66 = arith.addf %63, %65 : vector<8x64xf32>
    %c0_31 = arith.constant 0 : index
    %c0_32 = arith.constant 0 : index
    %67 = vector.load %arg5[%c0_31, %c0_32] : memref<1x64xf32, #tpu.memory_space<vmem>>, vector<1x64xf32>
    %cst_33 = arith.constant 5.000000e-01 : f32
    %68 = vector.broadcast %cst_33 : f32 to vector<1x64xf32>
    %69 = arith.mulf %68, %67 : vector<1x64xf32>
    %70 = vector.broadcast %69 : vector<1x64xf32> to vector<8x64xf32>
    %71 = arith.mulf %70, %66 : vector<8x64xf32>
    %72 = math.tanh %71 : vector<8x64xf32>
    %cst_34 = arith.constant 1.000000e+00 : f32
    %73 = vector.broadcast %cst_34 : f32 to vector<8x64xf32>
    %74 = arith.addf %72, %73 : vector<8x64xf32>
    %cst_35 = arith.constant 5.000000e-01 : f32
    %75 = vector.broadcast %cst_35 : f32 to vector<8x64xf32>
    %76 = arith.mulf %75, %74 : vector<8x64xf32>
    %77 = arith.mulf %66, %76 : vector<8x64xf32>
    %78 = arith.truncf %77 : vector<8x64xf32> to vector<8x64xbf16>
    %c0_36 = arith.constant 0 : index
    %c0_37 = arith.constant 0 : index
    %79 = vector.load %arg6[%c0_36, %c0_37] : memref<64x128xbf16, #tpu.memory_space<vmem>>, vector<64x128xbf16>
    %cst_38 = arith.constant dense<0.000000e+00> : vector<8x128xf32>
    %80 = tpu.matmul %78, %79, %cst_38 {dimension_numbers = #tpu.dot_dimension_numbers<[1], [0], [0], [1], [0, 0, 1, 1], [], []>} : vector<8x64xbf16>, vector<64x128xbf16>, vector<8x128xf32> -> vector<8x128xf32>
    %c0_39 = arith.constant 0 : index
    %c0_40 = arith.constant 0 : index
    %81 = vector.load %arg7[%c0_39, %c0_40] : memref<1x128xf32, #tpu.memory_space<vmem>>, vector<1x128xf32>
    %82 = vector.broadcast %81 : vector<1x128xf32> to vector<8x128xf32>
    %83 = arith.addf %80, %82 : vector<8x128xf32>
    %c0_41 = arith.constant 0 : index
    %c0_42 = arith.constant 0 : index
    %84 = vector.load %arg8[%c0_41, %c0_42] : memref<1x128xf32, #tpu.memory_space<vmem>>, vector<1x128xf32>
    %cst_43 = arith.constant 5.000000e-01 : f32
    %85 = vector.broadcast %cst_43 : f32 to vector<1x128xf32>
    %86 = arith.mulf %85, %84 : vector<1x128xf32>
    %87 = vector.broadcast %86 : vector<1x128xf32> to vector<8x128xf32>
    %88 = arith.mulf %87, %83 : vector<8x128xf32>
    %89 = math.tanh %88 : vector<8x128xf32>
    %cst_44 = arith.constant 1.000000e+00 : f32
    %90 = vector.broadcast %cst_44 : f32 to vector<8x128xf32>
    %91 = arith.addf %89, %90 : vector<8x128xf32>
    %cst_45 = arith.constant 5.000000e-01 : f32
    %92 = vector.broadcast %cst_45 : f32 to vector<8x128xf32>
    %93 = arith.mulf %92, %91 : vector<8x128xf32>
    %94 = arith.mulf %83, %93 : vector<8x128xf32>
    %95 = arith.truncf %94 : vector<8x128xf32> to vector<8x128xbf16>
    %c0_46 = arith.constant 0 : index
    %c0_47 = arith.constant 0 : index
    %96 = vector.load %arg9[%c0_46, %c0_47] : memref<128x256xbf16, #tpu.memory_space<vmem>>, vector<128x256xbf16>
    %cst_48 = arith.constant dense<0.000000e+00> : vector<8x256xf32>
    %97 = tpu.matmul %95, %96, %cst_48 {dimension_numbers = #tpu.dot_dimension_numbers<[1], [0], [0], [1], [0, 0, 1, 1], [], []>} : vector<8x128xbf16>, vector<128x256xbf16>, vector<8x256xf32> -> vector<8x256xf32>
    %c0_49 = arith.constant 0 : index
    %c0_50 = arith.constant 0 : index
    %98 = vector.load %arg10[%c0_49, %c0_50] : memref<1x256xf32, #tpu.memory_space<vmem>>, vector<1x256xf32>
    %99 = vector.broadcast %98 : vector<1x256xf32> to vector<8x256xf32>
    %100 = arith.addf %97, %99 : vector<8x256xf32>
    %c0_51 = arith.constant 0 : index
    %c0_52 = arith.constant 0 : index
    %101 = vector.load %arg22[%c0_51, %c0_52] : memref<1x256xf32, #tpu.memory_space<vmem>>, vector<1x256xf32>
    %cst_53 = arith.constant 5.000000e-01 : f32
    %102 = vector.broadcast %cst_53 : f32 to vector<1x256xf32>
    %103 = arith.mulf %102, %101 : vector<1x256xf32>
    %104 = vector.broadcast %103 : vector<1x256xf32> to vector<8x256xf32>
    %105 = arith.mulf %104, %100 : vector<8x256xf32>
    %106 = math.tanh %105 : vector<8x256xf32>
    %cst_54 = arith.constant 1.000000e+00 : f32
    %107 = vector.broadcast %cst_54 : f32 to vector<8x256xf32>
    %108 = arith.addf %106, %107 : vector<8x256xf32>
    %cst_55 = arith.constant 5.000000e-01 : f32
    %109 = vector.broadcast %cst_55 : f32 to vector<8x256xf32>
    %110 = arith.mulf %109, %108 : vector<8x256xf32>
    %111 = arith.mulf %100, %110 : vector<8x256xf32>
    %c0_56 = arith.constant 0 : index
    %c0_57 = arith.constant 0 : index
    %112 = vector.load %arg23[%c0_56, %c0_57] : memref<1x1xf32, #tpu.memory_space<vmem>>, vector<1x1xf32>
    %113 = vector.extract %112[0, 0] : f32 from vector<1x1xf32>
    %cst_58 = arith.constant 5.000000e-01 : f32
    %114 = arith.mulf %cst_58, %113 : f32
    %115 = vector.broadcast %114 : f32 to vector<8x1xf32>
    %116 = arith.mulf %115, %52 : vector<8x1xf32>
    %117 = math.tanh %116 : vector<8x1xf32>
    %cst_59 = arith.constant 1.000000e+00 : f32
    %118 = vector.broadcast %cst_59 : f32 to vector<8x1xf32>
    %119 = arith.addf %117, %118 : vector<8x1xf32>
    %cst_60 = arith.constant 5.000000e-01 : f32
    %120 = vector.broadcast %cst_60 : f32 to vector<8x1xf32>
    %121 = arith.mulf %120, %119 : vector<8x1xf32>
    %122 = arith.mulf %52, %121 : vector<8x1xf32>
    %123 = arith.truncf %111 : vector<8x256xf32> to vector<8x256xbf16>
    %c0_61 = arith.constant 0 : index
    %c0_62 = arith.constant 0 : index
    %124 = vector.load %arg19[%c0_61, %c0_62] : memref<256x2xbf16, #tpu.memory_space<vmem>>, vector<256x2xbf16>
    %cst_63 = arith.constant dense<0.000000e+00> : vector<8x2xf32>
    %125 = tpu.matmul %123, %124, %cst_63 {dimension_numbers = #tpu.dot_dimension_numbers<[1], [0], [0], [1], [0, 0, 1, 1], [], []>} : vector<8x256xbf16>, vector<256x2xbf16>, vector<8x2xf32> -> vector<8x2xf32>
    %c0_64 = arith.constant 0 : index
    %c0_65 = arith.constant 0 : index
    %126 = vector.load %arg20[%c0_64, %c0_65] : memref<1x2xf32, #tpu.memory_space<vmem>>, vector<1x2xf32>
    %127 = vector.broadcast %122 : vector<8x1xf32> to vector<8x2xf32>
    %128 = vector.broadcast %126 : vector<1x2xf32> to vector<8x2xf32>
    %129 = arith.mulf %127, %128 : vector<8x2xf32>
    %130 = arith.addf %125, %129 : vector<8x2xf32>
    %c0_66 = arith.constant 0 : index
    %c0_67 = arith.constant 0 : index
    %131 = vector.load %arg21[%c0_66, %c0_67] : memref<1x2xf32, #tpu.memory_space<vmem>>, vector<1x2xf32>
    %132 = vector.broadcast %131 : vector<1x2xf32> to vector<8x2xf32>
    %133 = arith.addf %130, %132 : vector<8x2xf32>
    %134 = tpu.reciprocal %6 {approx = true} : vector<8x1xf32> -> vector<8x1xf32>
    %135 = arith.subf %0, %133 : vector<8x2xf32>
    %136 = vector.broadcast %134 : vector<8x1xf32> to vector<8x2xf32>
    %137 = arith.mulf %135, %136 : vector<8x2xf32>
    %c0_68 = arith.constant 0 : index
    %c0_69 = arith.constant 0 : index
    %138 = vector.load %arg24[%c0_68, %c0_69] : memref<8x2xf32, #tpu.memory_space<vmem>>, vector<8x2xf32>
    tpu.vector_store %arg24[%c0_68, %c0_69], %137 {strides = array<i32>} : memref<8x2xf32, #tpu.memory_space<vmem>>, vector<8x2xf32>,
    return
  }
  func.func @transform_0(%arg0: i32) -> (i32, i32) {
    %c0_i32 = arith.constant 0 : i32
    %c0_i32_0 = arith.constant 0 : i32
    return %arg0, %c0_i32 : i32, i32
  }
  func.func @transform_1(%arg0: i32) -> (i32, i32) {
    %c0_i32 = arith.constant 0 : i32
    %c0_i32_0 = arith.constant 0 : i32
    return %arg0, %c0_i32 : i32, i32
  }
  func.func @transform_2(%arg0: i32) -> (i32, i32) {
    %c0_i32 = arith.constant 0 : i32
    %c0_i32_0 = arith.constant 0 : i32
    %c0_i32_1 = arith.constant 0 : i32
    return %c0_i32, %c0_i32_0 : i32, i32
  }
  func.func @transform_3(%arg0: i32) -> (i32, i32) {
    %c0_i32 = arith.constant 0 : i32
    %c0_i32_0 = arith.constant 0 : i32
    %c0_i32_1 = arith.constant 0 : i32
    return %c0_i32, %c0_i32_0 : i32, i32
  }
  func.func @transform_4(%arg0: i32) -> (i32, i32) {
    %c0_i32 = arith.constant 0 : i32
    %c0_i32_0 = arith.constant 0 : i32
    %c0_i32_1 = arith.constant 0 : i32
    return %c0_i32, %c0_i32_0 : i32, i32
  }
  func.func @transform_5(%arg0: i32) -> (i32, i32) {
    %c0_i32 = arith.constant 0 : i32
    %c0_i32_0 = arith.constant 0 : i32
    %c0_i32_1 = arith.constant 0 : i32
    return %c0_i32, %c0_i32_0 : i32, i32
  }
  func.func @transform_6(%arg0: i32) -> (i32, i32) {
    %c0_i32 = arith.constant 0 : i32
    %c0_i32_0 = arith.constant 0 : i32
    %c0_i32_1 = arith.constant 0 : i32
    return %c0_i32, %c0_i32_0 : i32, i32
  }
  func.func @transform_7(%arg0: i32) -> (i32, i32) {
    %c0_i32 = arith.constant 0 : i32
    %c0_i32_0 = arith.constant 0 : i32
    %c0_i32_1 = arith.constant 0 : i32
    return %c0_i32, %c0_i32_0 : i32, i32
  }
  func.func @transform_8(%arg0: i32) -> (i32, i32) {
    %c0_i32 = arith.constant 0 : i32
    %c0_i32_0 = arith.constant 0 : i32
    %c0_i32_1 = arith.constant 0 : i32
    return %c0_i32, %c0_i32_0 : i32, i32
  }
  func.func @transform_9(%arg0: i32) -> (i32, i32) {
    %c0_i32 = arith.constant 0 : i32
    %c0_i32_0 = arith.constant 0 : i32
    %c0_i32_1 = arith.constant 0 : i32
    return %c0_i32, %c0_i32_0 : i32, i32
  }
  func.func @transform_10(%arg0: i32) -> (i32, i32) {
    %c0_i32 = arith.constant 0 : i32
    %c0_i32_0 = arith.constant 0 : i32
    %c0_i32_1 = arith.constant 0 : i32
    return %c0_i32, %c0_i32_0 : i32, i32
  }
  func.func @transform_11(%arg0: i32) -> (i32, i32) {
    %c0_i32 = arith.constant 0 : i32
    %c0_i32_0 = arith.constant 0 : i32
    %c0_i32_1 = arith.constant 0 : i32
    return %c0_i32, %c0_i32_0 : i32, i32
  }
  func.func @transform_12(%arg0: i32) -> (i32, i32) {
    %c0_i32 = arith.constant 0 : i32
    %c0_i32_0 = arith.constant 0 : i32
    %c0_i32_1 = arith.constant 0 : i32
    return %c0_i32, %c0_i32_0 : i32, i32
  }
  func.func @transform_13(%arg0: i32) -> (i32, i32) {
    %c0_i32 = arith.constant 0 : i32
    %c0_i32_0 = arith.constant 0 : i32
    %c0_i32_1 = arith.constant 0 : i32
    return %c0_i32, %c0_i32_0 : i32, i32
  }
  func.func @transform_14(%arg0: i32) -> (i32, i32) {
    %c0_i32 = arith.constant 0 : i32
    %c0_i32_0 = arith.constant 0 : i32
    %c0_i32_1 = arith.constant 0 : i32
    return %c0_i32, %c0_i32_0 : i32, i32
  }
  func.func @transform_15(%arg0: i32) -> (i32, i32) {
    %c0_i32 = arith.constant 0 : i32
    %c0_i32_0 = arith.constant 0 : i32
    %c0_i32_1 = arith.constant 0 : i32
    return %c0_i32, %c0_i32_0 : i32, i32
  }
  func.func @transform_16(%arg0: i32) -> (i32, i32) {
    %c0_i32 = arith.constant 0 : i32
    %c0_i32_0 = arith.constant 0 : i32
    %c0_i32_1 = arith.constant 0 : i32
    return %c0_i32, %c0_i32_0 : i32, i32
  }
  func.func @transform_17(%arg0: i32) -> (i32, i32) {
    %c0_i32 = arith.constant 0 : i32
    %c0_i32_0 = arith.constant 0 : i32
    %c0_i32_1 = arith.constant 0 : i32
    return %c0_i32, %c0_i32_0 : i32, i32
  }
  func.func @transform_18(%arg0: i32) -> (i32, i32) {
    %c0_i32 = arith.constant 0 : i32
    %c0_i32_0 = arith.constant 0 : i32
    %c0_i32_1 = arith.constant 0 : i32
    return %c0_i32, %c0_i32_0 : i32, i32
  }
  func.func @transform_19(%arg0: i32) -> (i32, i32) {
    %c0_i32 = arith.constant 0 : i32
    %c0_i32_0 = arith.constant 0 : i32
    %c0_i32_1 = arith.constant 0 : i32
    return %c0_i32, %c0_i32_0 : i32, i32
  }
  func.func @transform_20(%arg0: i32) -> (i32, i32) {
    %c0_i32 = arith.constant 0 : i32
    %c0_i32_0 = arith.constant 0 : i32
    %c0_i32_1 = arith.constant 0 : i32
    return %c0_i32, %c0_i32_0 : i32, i32
  }
  func.func @transform_21(%arg0: i32) -> (i32, i32) {
    %c0_i32 = arith.constant 0 : i32
    %c0_i32_0 = arith.constant 0 : i32
    %c0_i32_1 = arith.constant 0 : i32
    return %c0_i32, %c0_i32_0 : i32, i32
  }
  func.func @transform_22(%arg0: i32) -> (i32, i32) {
    %c0_i32 = arith.constant 0 : i32
    %c0_i32_0 = arith.constant 0 : i32
    %c0_i32_1 = arith.constant 0 : i32
    return %c0_i32, %c0_i32_0 : i32, i32
  }
  func.func @transform_23(%arg0: i32) -> (i32, i32) {
    %c0_i32 = arith.constant 0 : i32
    %c0_i32_0 = arith.constant 0 : i32
    return %arg0, %c0_i32 : i32, i32
  }
}

</mosaic_0001>

<llo_original>
// kernel: simple_score_fn_forward.1
$region0: #{simple_score_fn_forward.1}
  #allocation0 [shape = 'u32[]', space=smem, size = 0x4, offset = 0x4, fixed_abs, tag = 'smem constant byte address 0x4 - core index']
  #allocation1 [shape = 'u32[72,128]{1,0:T(1,128)}', space=vmem, size = 0x9000, scoped, tag = 'internal scratch']
  #allocation2 [shape = 'f32[1,1]{1,0:T(1,128)S(1)}', space=vmem, size = 0x200, scoped, tag = 'scoped memory for simple_score_fn_forward.1']
  #allocation3 [shape = 'f32[1,1]{1,0:T(1,128)S(1)}', space=vmem, size = 0x200, scoped, tag = 'scoped memory for simple_score_fn_forward.1']
  #allocation4 [shape = 'f32[1,1]{1,0:T(1,128)S(1)}', space=vmem, size = 0x200, scoped, tag = 'scoped memory for simple_score_fn_forward.1']
  #allocation5 [shape = 'f32[1,1]{1,0:T(1,128)S(1)}', space=vmem, size = 0x200, scoped, tag = 'scoped memory for simple_score_fn_forward.1']
  #allocation6 [shape = 'f32[1,1]{1,0:T(1,128)S(1)}', space=vmem, size = 0x200, scoped, tag = 'scoped memory for simple_score_fn_forward.1']
  #allocation7 [shape = 'f32[1,1]{1,0:T(1,128)S(1)}', space=vmem, size = 0x200, scoped, tag = 'scoped memory for simple_score_fn_forward.1']
  #allocation8 [shape = 'f32[1,1]{1,0:T(1,128)S(1)}', space=vmem, size = 0x200, scoped, tag = 'scoped memory for simple_score_fn_forward.1']
  #allocation9 [shape = 'f32[1,1]{1,0:T(1,128)S(1)}', space=vmem, size = 0x200, scoped, tag = 'scoped memory for simple_score_fn_forward.1']
  #allocation10 [shape = 'f32[1,1]{1,0:T(1,128)S(1)}', space=vmem, size = 0x200, scoped, tag = 'scoped memory for simple_score_fn_forward.1']
  %s0 = inlined_call_operand.vmem [shape: f32[8,2], index: 0, kind: input, shape index: {}]
  %s1 = inlined_call_operand.vmem [shape: f32[8,1], index: 1, kind: input, shape index: {}]
  %s2 = inlined_call_operand.vmem [shape: f32[2,64], index: 2, kind: input, shape index: {}]
  %s3 = inlined_call_operand.vmem [shape: f32[1,64], index: 3, kind: input, shape index: {}]
  %s4 = inlined_call_operand.vmem [shape: f32[1,64], index: 4, kind: input, shape index: {}]
  %s5 = inlined_call_operand.vmem [shape: bf16[64,128], index: 5, kind: input, shape index: {}]
  %s6 = inlined_call_operand.vmem [shape: f32[1,128], index: 6, kind: input, shape index: {}]
  %s7 = inlined_call_operand.vmem [shape: f32[1,128], index: 7, kind: input, shape index: {}]
  %s8 = inlined_call_operand.vmem [shape: bf16[128,256], index: 8, kind: input, shape index: {}]
  %s9 = inlined_call_operand.vmem [shape: f32[1,256], index: 9, kind: input, shape index: {}]
  %s10 = inlined_call_operand.<no memory space> [shape: f32[1,1], index: 10, kind: input, shape index: {}]
  %s11 = inlined_call_operand.<no memory space> [shape: f32[1,1], index: 11, kind: input, shape index: {}]
  %s12 = inlined_call_operand.<no memory space> [shape: f32[1,1], index: 12, kind: input, shape index: {}]
  %s13 = inlined_call_operand.<no memory space> [shape: f32[1,1], index: 13, kind: input, shape index: {}]
  %s14 = inlined_call_operand.<no memory space> [shape: f32[1,1], index: 14, kind: input, shape index: {}]
  %s15 = inlined_call_operand.<no memory space> [shape: f32[1,1], index: 15, kind: input, shape index: {}]
  %s16 = inlined_call_operand.<no memory space> [shape: f32[1,1], index: 16, kind: input, shape index: {}]
  %s17 = inlined_call_operand.<no memory space> [shape: f32[1,1], index: 17, kind: input, shape index: {}]
  %s18 = inlined_call_operand.vmem [shape: bf16[256,2], index: 18, kind: input, shape index: {}]
  %s19 = inlined_call_operand.vmem [shape: f32[1,2], index: 19, kind: input, shape index: {}]
  %s20 = inlined_call_operand.vmem [shape: f32[1,2], index: 20, kind: input, shape index: {}]
  %s21 = inlined_call_operand.vmem [shape: f32[1,256], index: 21, kind: input, shape index: {}]
  %s22 = inlined_call_operand.<no memory space> [shape: f32[1,1], index: 22, kind: input, shape index: {}]
  %s23 = inlined_call_operand.vmem [shape: f32[8,2], index: 23, kind: output, shape index: {}]
  %s24 = sld [smem:[#allocation0]]
  $region102: #{simple_score_fn_forward.1} parent=0
    _
  %s26 = ssub.s32 1, %s24
  %s27 = scalar_select 0, %s26, %s24
  %v28 = vstv %s10
  %29 = vst [vmem:[#allocation2] sm:$0x1] %v28
  %v30 = vstv %s11
  %31 = vst [vmem:[#allocation3] sm:$0x1] %v30
  %v32 = vstv %s12
  %33 = vst [vmem:[#allocation4] sm:$0x1] %v32
  %v34 = vstv %s13
  %35 = vst [vmem:[#allocation5] sm:$0x1] %v34
  %v36 = vstv %s14
  %37 = vst [vmem:[#allocation6] sm:$0x1] %v36
  %v38 = vstv %s15
  %39 = vst [vmem:[#allocation7] sm:$0x1] %v38
  %v40 = vstv %s16
  %41 = vst [vmem:[#allocation8] sm:$0x1] %v40
  %v42 = vstv %s17
  %43 = vst [vmem:[#allocation9] sm:$0x1] %v42
  %v44 = vstv %s22
  %45 = vst [vmem:[#allocation10] sm:$0x1] %v44
  // Predicated region
  $region2: #{simple_score_fn_forward.1} parent=0 // pred_check
    _
  $region3: #{simple_score_fn_forward.1} parent=0 // pred_check_branch
    %47 = sbr.rel (0) target = $region5
  $region4: #{simple_score_fn_forward.1} parent=0 // pred_region
    _
  $region5: #{simple_score_fn_forward.1} parent=0 // pred_fallthru
    _
  // Predicated region
  $region6: #{simple_score_fn_forward.1} parent=0 // pred_check
    _
  $region7: #{simple_score_fn_forward.1} parent=0 // pred_check_branch
    %49 = sbr.rel (0) target = $region9
  $region8: #{simple_score_fn_forward.1} parent=0 // pred_region
    _
  $region9: #{simple_score_fn_forward.1} parent=0 // pred_fallthru
    _
  // Predicated region
  $region10: #{simple_score_fn_forward.1} parent=0 // pred_check
    _
  $region11: #{simple_score_fn_forward.1} parent=0 // pred_check_branch
    %51 = sbr.rel (0) target = $region13
  $region12: #{simple_score_fn_forward.1} parent=0 // pred_region
    _
  $region13: #{simple_score_fn_forward.1} parent=0 // pred_fallthru
    _
  // Predicated region
  $region14: #{simple_score_fn_forward.1} parent=0 // pred_check
    _
  $region15: #{simple_score_fn_forward.1} parent=0 // pred_check_branch
    %53 = sbr.rel (0) target = $region17
  $region16: #{simple_score_fn_forward.1} parent=0 // pred_region
    _
  $region17: #{simple_score_fn_forward.1} parent=0 // pred_fallthru
    _
  // Predicated region
  $region18: #{simple_score_fn_forward.1} parent=0 // pred_check
    _
  $region19: #{simple_score_fn_forward.1} parent=0 // pred_check_branch
    %55 = sbr.rel (0) target = $region21
  $region20: #{simple_score_fn_forward.1} parent=0 // pred_region
    _
  $region21: #{simple_score_fn_forward.1} parent=0 // pred_fallthru
    _
  // Predicated region
  $region22: #{simple_score_fn_forward.1} parent=0 // pred_check
    _
  $region23: #{simple_score_fn_forward.1} parent=0 // pred_check_branch
    %57 = sbr.rel (0) target = $region25
  $region24: #{simple_score_fn_forward.1} parent=0 // pred_region
    _
  $region25: #{simple_score_fn_forward.1} parent=0 // pred_fallthru
    _
  // Predicated region
  $region26: #{simple_score_fn_forward.1} parent=0 // pred_check
    _
  $region27: #{simple_score_fn_forward.1} parent=0 // pred_check_branch
    %59 = sbr.rel (0) target = $region29
  $region28: #{simple_score_fn_forward.1} parent=0 // pred_region
    _
  $region29: #{simple_score_fn_forward.1} parent=0 // pred_fallthru
    _
  // Predicated region
  $region30: #{simple_score_fn_forward.1} parent=0 // pred_check
    _
  $region31: #{simple_score_fn_forward.1} parent=0 // pred_check_branch
    %61 = sbr.rel (0) target = $region33
  $region32: #{simple_score_fn_forward.1} parent=0 // pred_region
    _
  $region33: #{simple_score_fn_forward.1} parent=0 // pred_fallthru
    _
  // Predicated region
  $region34: #{simple_score_fn_forward.1} parent=0 // pred_check
    _
  $region35: #{simple_score_fn_forward.1} parent=0 // pred_check_branch
    %63 = sbr.rel (0) target = $region37
  $region36: #{simple_score_fn_forward.1} parent=0 // pred_region
    _
  $region37: #{simple_score_fn_forward.1} parent=0 // pred_fallthru
    _
  // Predicated region
  $region38: #{simple_score_fn_forward.1} parent=0 // pred_check
    _
  $region39: #{simple_score_fn_forward.1} parent=0 // pred_check_branch
    %65 = sbr.rel (0) target = $region41
  $region40: #{simple_score_fn_forward.1} parent=0 // pred_region
    _
  $region41: #{simple_score_fn_forward.1} parent=0 // pred_fallthru
    _
  // Predicated region
  $region42: #{simple_score_fn_forward.1} parent=0 // pred_check
    _
  $region43: #{simple_score_fn_forward.1} parent=0 // pred_check_branch
    %67 = sbr.rel (0) target = $region45
  $region44: #{simple_score_fn_forward.1} parent=0 // pred_region
    _
  $region45: #{simple_score_fn_forward.1} parent=0 // pred_fallthru
    _
  // Predicated region
  $region46: #{simple_score_fn_forward.1} parent=0 // pred_check
    _
  $region47: #{simple_score_fn_forward.1} parent=0 // pred_check_branch
    %69 = sbr.rel (0) target = $region49
  $region48: #{simple_score_fn_forward.1} parent=0 // pred_region
    _
  $region49: #{simple_score_fn_forward.1} parent=0 // pred_fallthru
    _
  // Predicated region
  $region50: #{simple_score_fn_forward.1} parent=0 // pred_check
    _
  $region51: #{simple_score_fn_forward.1} parent=0 // pred_check_branch
    %71 = sbr.rel (0) target = $region53
  $region52: #{simple_score_fn_forward.1} parent=0 // pred_region
    _
  $region53: #{simple_score_fn_forward.1} parent=0 // pred_fallthru
    _
  // Predicated region
  $region54: #{simple_score_fn_forward.1} parent=0 // pred_check
    _
  $region55: #{simple_score_fn_forward.1} parent=0 // pred_check_branch
    %73 = sbr.rel (0) target = $region57
  $region56: #{simple_score_fn_forward.1} parent=0 // pred_region
    _
  $region57: #{simple_score_fn_forward.1} parent=0 // pred_fallthru
    _
  // Predicated region
  $region58: #{simple_score_fn_forward.1} parent=0 // pred_check
    _
  $region59: #{simple_score_fn_forward.1} parent=0 // pred_check_branch
    %75 = sbr.rel (0) target = $region61
  $region60: #{simple_score_fn_forward.1} parent=0 // pred_region
    _
  $region61: #{simple_score_fn_forward.1} parent=0 // pred_fallthru
    _
  // Predicated region
  $region62: #{simple_score_fn_forward.1} parent=0 // pred_check
    _
  $region63: #{simple_score_fn_forward.1} parent=0 // pred_check_branch
    %77 = sbr.rel (0) target = $region65
  $region64: #{simple_score_fn_forward.1} parent=0 // pred_region
    _
  $region65: #{simple_score_fn_forward.1} parent=0 // pred_fallthru
    _
  // Predicated region
  $region66: #{simple_score_fn_forward.1} parent=0 // pred_check
    _
  $region67: #{simple_score_fn_forward.1} parent=0 // pred_check_branch
    %79 = sbr.rel (0) target = $region69
  $region68: #{simple_score_fn_forward.1} parent=0 // pred_region
    _
  $region69: #{simple_score_fn_forward.1} parent=0 // pred_fallthru
    _
  // Predicated region
  $region70: #{simple_score_fn_forward.1} parent=0 // pred_check
    _
  $region71: #{simple_score_fn_forward.1} parent=0 // pred_check_branch
    %81 = sbr.rel (0) target = $region73
  $region72: #{simple_score_fn_forward.1} parent=0 // pred_region
    _
  $region73: #{simple_score_fn_forward.1} parent=0 // pred_fallthru
    _
  // Predicated region
  $region74: #{simple_score_fn_forward.1} parent=0 // pred_check
    _
  $region75: #{simple_score_fn_forward.1} parent=0 // pred_check_branch
    %83 = sbr.rel (0) target = $region77
  $region76: #{simple_score_fn_forward.1} parent=0 // pred_region
    _
  $region77: #{simple_score_fn_forward.1} parent=0 // pred_fallthru
    _
  // Predicated region
  $region78: #{simple_score_fn_forward.1} parent=0 // pred_check
    _
  $region79: #{simple_score_fn_forward.1} parent=0 // pred_check_branch
    %85 = sbr.rel (0) target = $region81
  $region80: #{simple_score_fn_forward.1} parent=0 // pred_region
    _
  $region81: #{simple_score_fn_forward.1} parent=0 // pred_fallthru
    _
  // Predicated region
  $region82: #{simple_score_fn_forward.1} parent=0 // pred_check
    _
  $region83: #{simple_score_fn_forward.1} parent=0 // pred_check_branch
    %87 = sbr.rel (0) target = $region85
  $region84: #{simple_score_fn_forward.1} parent=0 // pred_region
    _
  $region85: #{simple_score_fn_forward.1} parent=0 // pred_fallthru
    _
  // Predicated region
  $region86: #{simple_score_fn_forward.1} parent=0 // pred_check
    _
  $region87: #{simple_score_fn_forward.1} parent=0 // pred_check_branch
    %89 = sbr.rel (0) target = $region89
  $region88: #{simple_score_fn_forward.1} parent=0 // pred_region
    _
  $region89: #{simple_score_fn_forward.1} parent=0 // pred_fallthru
    _
  // Predicated region
  $region90: #{simple_score_fn_forward.1} parent=0 // pred_check
    _
  $region91: #{simple_score_fn_forward.1} parent=0 // pred_check_branch
    %91 = sbr.rel (0) target = $region93
  $region92: #{simple_score_fn_forward.1} parent=0 // pred_region
    _
  $region93: #{simple_score_fn_forward.1} parent=0 // pred_fallthru
    _
  %v93 = vld [vmem:[%s0] sm:$0xff]
  %v94 = vld [vmem:[%s1] sm:$0xff]
  %v95 = vmul.f32 %v94, 4.6051702
  %v96 = vmul.f32 %v95, 1.442695
  %v97 = vpow.pop %v96
  %v98 = vmul.f32 %v97, 0.01
  %v99 = vld [vmem:[#allocation2] sm:$0x1]
  %s100 = vtos %v99
  %v101 = vstv %s100
  %v102 = vmul.f32 %v98, %v101
  %v103 = vld [vmem:[#allocation3] sm:$0x1]
  %s104 = vtos %v103
  %v105 = vstv %s104
  %v106 = vadd.f32 %v102, %v105
  %v107 = vld [vmem:[#allocation4] sm:$0x1]
  %s108 = vtos %v107
  %s109 = smul.f32 %s108, 0.5
  %v110 = vstv %s109
  %v111 = vmul.f32 %v110, %v106
  %v112 = vtanh.pop %v111
  %v113 = vadd.f32 %v112, 1.0
  %v114 = vmul.f32 %v113, 0.5
  %v115 = vmul.f32 %v106, %v114
  %v116 = vld [vmem:[#allocation5] sm:$0x1]
  %s117 = vtos %v116
  %v118 = vstv %s117
  %v119 = vmul.f32 %v115, %v118
  %v120 = vld [vmem:[#allocation6] sm:$0x1]
  %s121 = vtos %v120
  %v122 = vstv %s121
  %v123 = vadd.f32 %v119, %v122
  %v124 = vld [vmem:[#allocation7] sm:$0x1]
  %s125 = vtos %v124
  %s126 = smul.f32 %s125, 0.5
  %v127 = vstv %s126
  %v128 = vmul.f32 %v127, %v123
  %v129 = vtanh.pop %v128
  %v130 = vadd.f32 %v129, 1.0
  %v131 = vmul.f32 %v130, 0.5
  %v132 = vmul.f32 %v123, %v131
  %v133 = vld [vmem:[#allocation8] sm:$0x1]
  %s134 = vtos %v133
  %v135 = vstv %s134
  %v136 = vmul.f32 %v132, %v135
  %v137 = vld [vmem:[#allocation9] sm:$0x1]
  %s138 = vtos %v137
  %v139 = vstv %s138
  %v140 = vadd.f32 %v136, %v139
  %v141 = vld [vmem:[%s2] sm:$0x1]
  %143 = vset.pattern.permute.xlu0 0
  %144 = vperm.xlu0 %143, %v93
  %v145 = vpop.permute.xlu0 %144
  %v147 = vperm.slane %v141, 0
  %v148 = vmul.f32 %v145, %v147
  %v149 = vld [vmem:[%s2 + $0x1] sm:$0x1]
  %150 = vset.pattern.permute.xlu0 1
  %151 = vperm.xlu0 %150, %v93
  %v152 = vpop.permute.xlu0 %151
  %v154 = vperm.slane %v149, 0
  %v155 = vmul.f32 %v152, %v154
  %v156 = vadd.f32 %v148, %v155
  %v157 = vld [vmem:[%s3] sm:$0x1]
  %v159 = vperm.slane %v157, 0
  %v161 = vadd.f32 %v156, %v159
  %v162 = vld [vmem:[%s4] sm:$0x1]
  %v163 = vmul.f32 %v162, 0.5
  %v165 = vperm.slane %v163, 0
  %v167 = vmul.f32 %v165, %v161
  %v168 = vtanh.pop %v167
  %v169 = vadd.f32 %v168, 1.0
  %v170 = vmul.f32 %v169, 0.5
  %v171 = vmul.f32 %v161, %v170
  %v172 = vpack.c.bf16 %v171, %v171
  %v173 = vld [vmem:[%s5] sm:$0xf]
  %v174 = vld [vmem:[%s5 + $0x4] sm:$0xf]
  %v175 = vld [vmem:[%s5 + $0x8] sm:$0xf]
  %v176 = vld [vmem:[%s5 + $0xc] sm:$0xf]
  %v177 = vld [vmem:[%s5 + $0x10] sm:$0xf]
  %v178 = vld [vmem:[%s5 + $0x14] sm:$0xf]
  %v179 = vld [vmem:[%s5 + $0x18] sm:$0xf]
  %v180 = vld [vmem:[%s5 + $0x1c] sm:$0xf]
  %v181 = vld [vmem:[%s6] sm:$0x1]
  %v183 = vperm.slane %v181, 0
  %v193 = vunpack.c.l.b16 %v173
  %v194 = vunpack.c.l.b16 %v174
  %v195 = vunpack.c.l.b16 %v175
  %v196 = vunpack.c.l.b16 %v176
  %v197 = vunpack.c.l.b16 %v177
  %v198 = vunpack.c.l.b16 %v178
  %v199 = vunpack.c.l.b16 %v179
  %v200 = vunpack.c.l.b16 %v180
  %v201 = vpack.c.b16 %v194, %v193
  %v202 = vpack.c.b16 %v196, %v195
  %v203 = vpack.c.b16 %v198, %v197
  %v204 = vpack.c.b16 %v200, %v199
  %vm209 = vcmask 523264
  %v211 = vsel %vm209, %v172, 0
  %213 = vmatpush.bf16.msra.mxu0 0
  %214 = vmatpush.bf16.msra.mxu0 0
  %215 = vmatpush.bf16.msra.mxu0 0
  %216 = vmatpush.bf16.msra.mxu0 0
  %217 = vmatpush.bf16.msra.mxu0 %v204
  %218 = vmatpush.bf16.msra.mxu0 %v203
  %219 = vmatpush.bf16.msra.mxu0 %v202
  %220 = vmatpush.bf16.msra.mxu0 %v201
  %221 = vmatmul.bf16.gmra.mxu0 %v211
  %v222 = vpop.f32.mrf.mxu0
  %v223 = vadd.f32 %v183, %v222
  %v224 = vpop.f32.mrf.mxu0
  %225 = vdwg.mxu0
  %v226 = vld [vmem:[%s7] sm:$0x1]
  %v227 = vmul.f32 %v226, 0.5
  %v229 = vperm.slane %v227, 0
  %v231 = vmul.f32 %v229, %v223
  %v232 = vtanh.pop %v231
  %v233 = vadd.f32 %v232, 1.0
  %v234 = vmul.f32 %v233, 0.5
  %v235 = vmul.f32 %v223, %v234
  %v236 = vpack.c.bf16 %v235, %v235
  %v237 = vld [vmem:[%s8] sm:$0xff]
  %v238 = vld [vmem:[%s8 + $0x8] sm:$0xff]
  %v239 = vld [vmem:[%s8 + $0x10] sm:$0xff]
  %v240 = vld [vmem:[%s8 + $0x18] sm:$0xff]
  %v241 = vld [vmem:[%s8 + $0x20] sm:$0xff]
  %v242 = vld [vmem:[%s8 + $0x28] sm:$0xff]
  %v243 = vld [vmem:[%s8 + $0x30] sm:$0xff]
  %v244 = vld [vmem:[%s8 + $0x38] sm:$0xff]
  %v245 = vld [vmem:[%s8 + $0x40] sm:$0xff]
  %v246 = vld [vmem:[%s8 + $0x48] sm:$0xff]
  %v247 = vld [vmem:[%s8 + $0x50] sm:$0xff]
  %v248 = vld [vmem:[%s8 + $0x58] sm:$0xff]
  %v249 = vld [vmem:[%s8 + $0x60] sm:$0xff]
  %v250 = vld [vmem:[%s8 + $0x68] sm:$0xff]
  %v251 = vld [vmem:[%s8 + $0x70] sm:$0xff]
  %v252 = vld [vmem:[%s8 + $0x78] sm:$0xff]
  %v253 = vld [vmem:[%s9] sm:$0x3]
  %v255 = vperm.slane %v253, 0
  %v256 = vperm.slane %v253, 1
  %v275 = vunpack.c.l.b16 %v237
  %v276 = vunpack.c.h.b16 %v237
  %v277 = vunpack.c.l.b16 %v238
  %v278 = vunpack.c.h.b16 %v238
  %v279 = vunpack.c.l.b16 %v239
  %v280 = vunpack.c.h.b16 %v239
  %v281 = vunpack.c.l.b16 %v240
  %v282 = vunpack.c.h.b16 %v240
  %v283 = vunpack.c.l.b16 %v241
  %v284 = vunpack.c.h.b16 %v241
  %v285 = vunpack.c.l.b16 %v242
  %v286 = vunpack.c.h.b16 %v242
  %v287 = vunpack.c.l.b16 %v243
  %v288 = vunpack.c.h.b16 %v243
  %v289 = vunpack.c.l.b16 %v244
  %v290 = vunpack.c.h.b16 %v244
  %v291 = vunpack.c.l.b16 %v245
  %v292 = vunpack.c.h.b16 %v245
  %v293 = vunpack.c.l.b16 %v246
  %v294 = vunpack.c.h.b16 %v246
  %v295 = vunpack.c.l.b16 %v247
  %v296 = vunpack.c.h.b16 %v247
  %v297 = vunpack.c.l.b16 %v248
  %v298 = vunpack.c.h.b16 %v248
  %v299 = vunpack.c.l.b16 %v249
  %v300 = vunpack.c.h.b16 %v249
  %v301 = vunpack.c.l.b16 %v250
  %v302 = vunpack.c.h.b16 %v250
  %v303 = vunpack.c.l.b16 %v251
  %v304 = vunpack.c.h.b16 %v251
  %v305 = vunpack.c.l.b16 %v252
  %v306 = vunpack.c.h.b16 %v252
  %v307 = vpack.c.b16 %v277, %v275
  %v308 = vpack.c.b16 %v278, %v276
  %v309 = vpack.c.b16 %v281, %v279
  %v310 = vpack.c.b16 %v282, %v280
  %v311 = vpack.c.b16 %v285, %v283
  %v312 = vpack.c.b16 %v286, %v284
  %v313 = vpack.c.b16 %v289, %v287
  %v314 = vpack.c.b16 %v290, %v288
  %v315 = vpack.c.b16 %v293, %v291
  %v316 = vpack.c.b16 %v294, %v292
  %v317 = vpack.c.b16 %v297, %v295
  %v318 = vpack.c.b16 %v298, %v296
  %v319 = vpack.c.b16 %v301, %v299
  %v320 = vpack.c.b16 %v302, %v300
  %v321 = vpack.c.b16 %v305, %v303
  %v322 = vpack.c.b16 %v306, %v304
  %339 = vmatpush.bf16.msra.mxu0 %v321
  %340 = vmatpush.bf16.msra.mxu0 %v319
  %341 = vmatpush.bf16.msra.mxu0 %v317
  %342 = vmatpush.bf16.msra.mxu0 %v315
  %343 = vmatpush.bf16.msra.mxu0 %v313
  %344 = vmatpush.bf16.msra.mxu0 %v311
  %345 = vmatpush.bf16.msra.mxu0 %v309
  %346 = vmatpush.bf16.msra.mxu0 %v307
  %347 = vmatmul.bf16.gmra.mxu0 %v236
  %v348 = vpop.f32.mrf.mxu0
  %v349 = vadd.f32 %v255, %v348
  %v350 = vpop.f32.mrf.mxu0
  %351 = vdwg.mxu0
  %352 = vmatpush.bf16.msra.mxu0 %v322
  %353 = vmatpush.bf16.msra.mxu0 %v320
  %354 = vmatpush.bf16.msra.mxu0 %v318
  %355 = vmatpush.bf16.msra.mxu0 %v316
  %356 = vmatpush.bf16.msra.mxu0 %v314
  %357 = vmatpush.bf16.msra.mxu0 %v312
  %358 = vmatpush.bf16.msra.mxu0 %v310
  %359 = vmatpush.bf16.msra.mxu0 %v308
  %360 = vmatmul.bf16.gmra.mxu0 %v236
  %v361 = vpop.f32.mrf.mxu0
  %v362 = vadd.f32 %v256, %v361
  %v363 = vpop.f32.mrf.mxu0
  %364 = vdwg.mxu0
  %v365 = vld [vmem:[%s21] sm:$0x3]
  %v366 = vmul.f32 %v365, 0.5
  %v368 = vperm.slane %v366, 0
  %v369 = vperm.slane %v366, 1
  %v372 = vmul.f32 %v368, %v349
  %v373 = vmul.f32 %v369, %v362
  %v374 = vtanh.pop %v372
  %v375 = vtanh.pop %v373
  %v376 = vadd.f32 %v374, 1.0
  %v377 = vadd.f32 %v375, 1.0
  %v378 = vmul.f32 %v376, 0.5
  %v379 = vmul.f32 %v377, 0.5
  %v380 = vmul.f32 %v349, %v378
  %v381 = vmul.f32 %v362, %v379
  %v382 = vld [vmem:[#allocation10] sm:$0x1]
  %s383 = vtos %v382
  %s384 = smul.f32 %s383, 0.5
  %v385 = vstv %s384
  %v386 = vmul.f32 %v385, %v140
  %v387 = vtanh.pop %v386
  %v388 = vadd.f32 %v387, 1.0
  %v389 = vmul.f32 %v388, 0.5
  %v390 = vmul.f32 %v140, %v389
  %v391 = vpack.c.bf16 %v380, %v380
  %v392 = vpack.c.bf16 %v381, %v381
  %v393 = vld [vmem:[%s18] sm:$0xf]
  %v394 = vld [vmem:[%s18 + $0x4] sm:$0xf]
  %v395 = vld [vmem:[%s18 + $0x8] sm:$0xf]
  %v396 = vld [vmem:[%s18 + $0xc] sm:$0xf]
  %v397 = vld [vmem:[%s18 + $0x10] sm:$0xf]
  %v398 = vld [vmem:[%s18 + $0x14] sm:$0xf]
  %v399 = vld [vmem:[%s18 + $0x18] sm:$0xf]
  %v400 = vld [vmem:[%s18 + $0x1c] sm:$0xf]
  %v401 = vld [vmem:[%s18 + $0x20] sm:$0xf]
  %v402 = vld [vmem:[%s18 + $0x24] sm:$0xf]
  %v403 = vld [vmem:[%s18 + $0x28] sm:$0xf]
  %v404 = vld [vmem:[%s18 + $0x2c] sm:$0xf]
  %v405 = vld [vmem:[%s18 + $0x30] sm:$0xf]
  %v406 = vld [vmem:[%s18 + $0x34] sm:$0xf]
  %v407 = vld [vmem:[%s18 + $0x38] sm:$0xf]
  %v408 = vld [vmem:[%s18 + $0x3c] sm:$0xf]
  %v409 = vld [vmem:[%s18 + $0x40] sm:$0xf]
  %v410 = vld [vmem:[%s18 + $0x44] sm:$0xf]
  %v411 = vld [vmem:[%s18 + $0x48] sm:$0xf]
  %v412 = vld [vmem:[%s18 + $0x4c] sm:$0xf]
  %v413 = vld [vmem:[%s18 + $0x50] sm:$0xf]
  %v414 = vld [vmem:[%s18 + $0x54] sm:$0xf]
  %v415 = vld [vmem:[%s18 + $0x58] sm:$0xf]
  %v416 = vld [vmem:[%s18 + $0x5c] sm:$0xf]
  %v417 = vld [vmem:[%s18 + $0x60] sm:$0xf]
  %v418 = vld [vmem:[%s18 + $0x64] sm:$0xf]
  %v419 = vld [vmem:[%s18 + $0x68] sm:$0xf]
  %v420 = vld [vmem:[%s18 + $0x6c] sm:$0xf]
  %v421 = vld [vmem:[%s18 + $0x70] sm:$0xf]
  %v422 = vld [vmem:[%s18 + $0x74] sm:$0xf]
  %v423 = vld [vmem:[%s18 + $0x78] sm:$0xf]
  %v424 = vld [vmem:[%s18 + $0x7c] sm:$0xf]
  %v425 = vld [vmem:[%s19] sm:$0x1]
  %427 = vset.pattern.permute.xlu0 0
  %428 = vperm.xlu0 %427, %v390
  %v429 = vpop.permute.xlu0 %428
  %v432 = vperm.slane %v425, 0
  %v434 = vmul.f32 %v429, %v432
  %v467 = vunpack.c.l.b16 %v393
  %v468 = vunpack.c.l.b16 %v394
  %v469 = vunpack.c.l.b16 %v395
  %v470 = vunpack.c.l.b16 %v396
  %v471 = vunpack.c.l.b16 %v397
  %v472 = vunpack.c.l.b16 %v398
  %v473 = vunpack.c.l.b16 %v399
  %v474 = vunpack.c.l.b16 %v400
  %v475 = vunpack.c.l.b16 %v401
  %v476 = vunpack.c.l.b16 %v402
  %v477 = vunpack.c.l.b16 %v403
  %v478 = vunpack.c.l.b16 %v404
  %v479 = vunpack.c.l.b16 %v405
  %v480 = vunpack.c.l.b16 %v406
  %v481 = vunpack.c.l.b16 %v407
  %v482 = vunpack.c.l.b16 %v408
  %v483 = vunpack.c.l.b16 %v409
  %v484 = vunpack.c.l.b16 %v410
  %v485 = vunpack.c.l.b16 %v411
  %v486 = vunpack.c.l.b16 %v412
  %v487 = vunpack.c.l.b16 %v413
  %v488 = vunpack.c.l.b16 %v414
  %v489 = vunpack.c.l.b16 %v415
  %v490 = vunpack.c.l.b16 %v416
  %v491 = vunpack.c.l.b16 %v417
  %v492 = vunpack.c.l.b16 %v418
  %v493 = vunpack.c.l.b16 %v419
  %v494 = vunpack.c.l.b16 %v420
  %v495 = vunpack.c.l.b16 %v421
  %v496 = vunpack.c.l.b16 %v422
  %v497 = vunpack.c.l.b16 %v423
  %v498 = vunpack.c.l.b16 %v424
  %v499 = vpack.c.b16 %v468, %v467
  %v500 = vpack.c.b16 %v470, %v469
  %v501 = vpack.c.b16 %v472, %v471
  %v502 = vpack.c.b16 %v474, %v473
  %v503 = vpack.c.b16 %v476, %v475
  %v504 = vpack.c.b16 %v478, %v477
  %v505 = vpack.c.b16 %v480, %v479
  %v506 = vpack.c.b16 %v482, %v481
  %v507 = vpack.c.b16 %v484, %v483
  %v508 = vpack.c.b16 %v486, %v485
  %v509 = vpack.c.b16 %v488, %v487
  %v510 = vpack.c.b16 %v490, %v489
  %v511 = vpack.c.b16 %v492, %v491
  %v512 = vpack.c.b16 %v494, %v493
  %v513 = vpack.c.b16 %v496, %v495
  %v514 = vpack.c.b16 %v498, %v497
  %531 = vmatpush.bf16.msra.mxu0 %v506
  %532 = vmatpush.bf16.msra.mxu0 %v505
  %533 = vmatpush.bf16.msra.mxu0 %v504
  %534 = vmatpush.bf16.msra.mxu0 %v503
  %535 = vmatpush.bf16.msra.mxu0 %v502
  %536 = vmatpush.bf16.msra.mxu0 %v501
  %537 = vmatpush.bf16.msra.mxu0 %v500
  %538 = vmatpush.bf16.msra.mxu0 %v499
  %539 = vmatmul.bf16.gmra.mxu0 %v391
  %v540 = vpop.f32.mrf.mxu0
  %v541 = vadd.f32 %v434, %v540
  %v542 = vpop.f32.mrf.mxu0
  %543 = vdwg.mxu0
  %544 = vmatpush.bf16.msra.mxu0 %v514
  %545 = vmatpush.bf16.msra.mxu0 %v513
  %546 = vmatpush.bf16.msra.mxu0 %v512
  %547 = vmatpush.bf16.msra.mxu0 %v511
  %548 = vmatpush.bf16.msra.mxu0 %v510
  %549 = vmatpush.bf16.msra.mxu0 %v509
  %550 = vmatpush.bf16.msra.mxu0 %v508
  %551 = vmatpush.bf16.msra.mxu0 %v507
  %552 = vmatmul.bf16.gmra.mxu0 %v392
  %v553 = vpop.f32.mrf.mxu0
  %v554 = vadd.f32 %v541, %v553
  %v555 = vpop.f32.mrf.mxu0
  %556 = vdwg.mxu0
  %v557 = vld [vmem:[%s20] sm:$0x1]
  %v559 = vperm.slane %v557, 0
  %v561 = vadd.f32 %v554, %v559
  %v562 = vrcp.pop %v98
  %v563 = vsub.f32 %v93, %v561
  %565 = vset.pattern.permute.xlu0 0
  %566 = vperm.xlu0 %565, %v562
  %v567 = vpop.permute.xlu0 %566
  %v569 = vmul.f32 %v563, %v567
  %vm570 = vcmask 15360
  %571 = vst.msk [vmem:[%s23] sm:$0xff] %vm570, %v569
  // Predicated region
  $region94: #{simple_score_fn_forward.1} parent=0 // pred_check
    _
  $region95: #{simple_score_fn_forward.1} parent=0 // pred_check_branch
    %573 = sbr.rel (0) target = $region97
  $region96: #{simple_score_fn_forward.1} parent=0 // pred_region
    _
  $region97: #{simple_score_fn_forward.1} parent=0 // pred_fallthru
    _
  // Predicated region
  $region98: #{simple_score_fn_forward.1} parent=0 // pred_check
    _
  $region99: #{simple_score_fn_forward.1} parent=0 // pred_check_branch
    %575 = sbr.rel (0) target = $region101
  $region100: #{simple_score_fn_forward.1} parent=0 // pred_region
    _
  $region101: #{simple_score_fn_forward.1} parent=0 // pred_fallthru
    _

</llo_original>
